<compile_context>
chip_gen: v6e
topology: v6e:2x2x1
jax: 0.10.0
libtpu: 0.0.40
codegen_flags: <defaults>
</compile_context>

<pallas_src>
import functools

import numpy as np
import jax
import jax.numpy as jnp
from jax.experimental import pallas as pl
from jax.experimental.pallas import tpu as pltpu


def _round_up(v, m):
    return (v + m - 1) // m * m


def _acorr_kernel(x_ref, r_ref, *, acr_order, const_scalars, norm):
    # x_ref: (Lp, TB) zero-padded frames (samples on sublanes, batch on lanes)
    # r_ref: (M+1, TB) lane-dense output, one row per lag
    x = x_ref[...].astype(jnp.float32)
    rows = []
    for m in range(acr_order + 1):
        # circular shift along the (zero-padded) frame axis == linear lag product
        xs = x if m == 0 else jnp.roll(x, -m, axis=0)
        rm = jnp.sum(x * xs, axis=0, keepdims=True)              # (1, TB)
        c = const_scalars[m]
        if c != 1.0:                                             # trace-time scalar
            rm = rm * c
        rows.append(rm)
    r = jnp.concatenate(rows, axis=0)                            # (M+1, TB)
    if norm:
        r0 = r[0:1, :]
        denom = jnp.where(r0 == 0.0, 1.0, r0)                    # guard padded cols
        r = r * pl.reciprocal(denom)
    r_ref[...] = r.astype(r_ref.dtype)


def autocorrelation_analysis(x, acr_order, frame_length, norm=False,
                             acf="none", block_b=None):
    """JAX/Pallas equivalent of diffsptk AutocorrelationAnalysis.forward.

    x : (..., L) framed waveform  ->  r : (..., M+1)
    """
    M = acr_order
    L = frame_length
    assert 0 <= M < L
    assert x.shape[-1] == L

    # Per-lag scaling (the module's registered `const` buffer) as Python floats
    # so they lower to jaxpr literals (no captured array constants).
    if acf == "none":
        const_np = np.ones((M + 1,), np.float64)
    elif acf == "biased":
        const_np = np.full((M + 1,), 1.0 / L, np.float64)
    elif acf == "unbiased":
        const_np = 1.0 / np.arange(L, L - M - 1, -1, dtype=np.float64)
    else:
        raise ValueError(f"acf {acf} is not supported")
    const_scalars = tuple(float(np.float32(c)) for c in const_np)

    lead = x.shape[:-1]
    x2 = x.reshape(-1, L)
    B = x2.shape[0]

    # Zero-pad the frame axis to Lp >= L+M (sublane multiple) so rolled
    # products never alias real samples (linear == circular).
    Lp = _round_up(L + M, 16)

    # Batch tile width (lanes): largest multiple of 128 whose double-buffered
    # input + output tiles stay well inside scoped VMEM on all generations
    # (v5e 16 MiB default, v6e/v7x 32 MiB default, v7x 64 MiB physical).
    itemsize = jnp.dtype(x.dtype).itemsize
    bytes_per_col = 2 * Lp * itemsize + 2 * (M + 1) * 4
    vmem_budget = 12 * 1024 * 1024
    tb_cap = max(128, (vmem_budget // max(bytes_per_col, 1)) // 128 * 128)
    if block_b is None:
        TB = min(tb_cap, _round_up(B, 128))
    else:
        TB = min(tb_cap, max(128, _round_up(block_b, 128)))
    Bp = _round_up(B, TB)

    # (Lp, Bp), original dtype (cast to f32 happens inside the kernel).
    xt = jnp.pad(x2, ((0, Bp - B), (0, Lp - L))).T

    kernel = functools.partial(_acorr_kernel, acr_order=M,
                               const_scalars=const_scalars, norm=norm)
    out = pl.pallas_call(
        kernel,
        out_shape=jax.ShapeDtypeStruct((M + 1, Bp), jnp.float32),
        grid=(Bp // TB,),
        in_specs=[pl.BlockSpec((Lp, TB), lambda i: (0, i))],
        out_specs=pl.BlockSpec((M + 1, TB), lambda i: (0, i)),
        compiler_params=pltpu.CompilerParams(
            dimension_semantics=("parallel",),
            vmem_limit_bytes=32 * 1024 * 1024),
    )(xt)

    return out[:, :B].T.reshape(*lead, M + 1)


def _reference_fft(x, acr_order, frame_length, norm, acf):
    """Pure-JAX mirror of the torch module (Spectrum -> irfft path)."""
    fft_length = frame_length + acr_order
    if fft_length % 2 == 1:
        fft_length += 1
    X = jnp.abs(jnp.fft.rfft(x, n=fft_length)) ** 2          # power spectrum
    r = jnp.fft.irfft(X, n=fft_length)[..., : acr_order + 1]
    if acf == "none":
        const = jnp.ones((acr_order + 1,), jnp.float32)
    elif acf == "biased":
        const = jnp.full((acr_order + 1,), 1.0 / frame_length, jnp.float32)
    else:  # unbiased
        const = 1.0 / jnp.arange(frame_length, frame_length - acr_order - 1,
                                 -1, dtype=jnp.float32)
    r = r * const
    if norm:
        r = r / r[..., :1]
    return r


if __name__ == "__main__":
    key = jax.random.PRNGKey(0)
    frame_length = 16      # L
    acr_order = 7          # M

    # (batch=2, channels=4, frame_length=16) framed waveform
    x = jax.random.normal(key, (2, 4, frame_length), dtype=jnp.float32)

    # unbiased acf, no normalization
    r = autocorrelation_analysis(x, acr_order, frame_length,
                                 norm=False, acf="unbiased")
    r = jax.block_until_ready(r)
    r_ref = _reference_fft(x, acr_order, frame_length, False, "unbiased")
    assert r.shape == (2, 4, acr_order + 1)
    assert jnp.allclose(r, r_ref, rtol=1e-4, atol=1e-4), (r, r_ref)

    # biased acf with normalization (exercises the pl.reciprocal path)
    rn = autocorrelation_analysis(x, acr_order, frame_length,
                                  norm=True, acf="biased")
    rn = jax.block_until_ready(rn)
    rn_ref = _reference_fft(x, acr_order, frame_length, True, "biased")
    assert jnp.allclose(rn, rn_ref, rtol=1e-4, atol=1e-4), (rn, rn_ref)

    print("KERNEL_OK")
</pallas_src>

<mosaic_0001>
module attributes {stable_mosaic.version = 11 : i64} {
  func.func @_acorr_kernel(%arg0: i32, %arg1: memref<32x128xf32, #tpu.memory_space<vmem>>, %arg2: memref<8x128xf32, #tpu.memory_space<vmem>>) attributes {dimension_semantics = [#tpu.dimension_semantics<parallel>], iteration_bounds = array<i64: 1>, scalar_prefetch = 0 : i64, scratch_operands = 0 : i64, tpu.core_type = #tpu.core_type<tc>, window_params = [{transform_indices = @transform_0, window_bounds = array<i64: 32, 128>}, {transform_indices = @transform_1, window_bounds = array<i64: 8, 128>}]} {
    %c0 = arith.constant 0 : index
    %c0_0 = arith.constant 0 : index
    %0 = vector.load %arg1[%c0, %c0_0] : memref<32x128xf32, #tpu.memory_space<vmem>>, vector<32x128xf32>
    %1 = arith.mulf %0, %0 : vector<32x128xf32>
    %cst = arith.constant dense<0.000000e+00> : vector<128xf32>
    %2 = vector.multi_reduction <add>, %1, %cst [0] : vector<32x128xf32> to vector<128xf32>
    %3 = vector.shape_cast %2 : vector<128xf32> to vector<1x128xf32>
    %cst_1 = arith.constant 6.250000e-02 : f32
    %4 = vector.broadcast %cst_1 : f32 to vector<1x128xf32>
    %5 = arith.mulf %3, %4 : vector<1x128xf32>
    %6 = vector.extract_strided_slice %0 {offsets = [1, 0], sizes = [31, 128], strides = [1, 1]} : vector<32x128xf32> to vector<31x128xf32>
    %7 = vector.extract_strided_slice %0 {offsets = [0, 0], sizes = [1, 128], strides = [1, 1]} : vector<32x128xf32> to vector<1x128xf32>
    %8 = tpu.concatenate %6, %7 in 0 : vector<31x128xf32>, vector<1x128xf32> -> vector<32x128xf32>
    %9 = arith.mulf %0, %8 : vector<32x128xf32>
    %cst_2 = arith.constant dense<0.000000e+00> : vector<128xf32>
    %10 = vector.multi_reduction <add>, %9, %cst_2 [0] : vector<32x128xf32> to vector<128xf32>
    %11 = vector.shape_cast %10 : vector<128xf32> to vector<1x128xf32>
    %cst_3 = arith.constant 0.0666666701 : f32
    %12 = vector.broadcast %cst_3 : f32 to vector<1x128xf32>
    %13 = arith.mulf %11, %12 : vector<1x128xf32>
    %14 = vector.extract_strided_slice %0 {offsets = [2, 0], sizes = [30, 128], strides = [1, 1]} : vector<32x128xf32> to vector<30x128xf32>
    %15 = vector.extract_strided_slice %0 {offsets = [0, 0], sizes = [2, 128], strides = [1, 1]} : vector<32x128xf32> to vector<2x128xf32>
    %16 = tpu.concatenate %14, %15 in 0 : vector<30x128xf32>, vector<2x128xf32> -> vector<32x128xf32>
    %17 = arith.mulf %0, %16 : vector<32x128xf32>
    %cst_4 = arith.constant dense<0.000000e+00> : vector<128xf32>
    %18 = vector.multi_reduction <add>, %17, %cst_4 [0] : vector<32x128xf32> to vector<128xf32>
    %19 = vector.shape_cast %18 : vector<128xf32> to vector<1x128xf32>
    %cst_5 = arith.constant 0.0714285746 : f32
    %20 = vector.broadcast %cst_5 : f32 to vector<1x128xf32>
    %21 = arith.mulf %19, %20 : vector<1x128xf32>
    %22 = vector.extract_strided_slice %0 {offsets = [3, 0], sizes = [29, 128], strides = [1, 1]} : vector<32x128xf32> to vector<29x128xf32>
    %23 = vector.extract_strided_slice %0 {offsets = [0, 0], sizes = [3, 128], strides = [1, 1]} : vector<32x128xf32> to vector<3x128xf32>
    %24 = tpu.concatenate %22, %23 in 0 : vector<29x128xf32>, vector<3x128xf32> -> vector<32x128xf32>
    %25 = arith.mulf %0, %24 : vector<32x128xf32>
    %cst_6 = arith.constant dense<0.000000e+00> : vector<128xf32>
    %26 = vector.multi_reduction <add>, %25, %cst_6 [0] : vector<32x128xf32> to vector<128xf32>
    %27 = vector.shape_cast %26 : vector<128xf32> to vector<1x128xf32>
    %cst_7 = arith.constant 0.0769230798 : f32
    %28 = vector.broadcast %cst_7 : f32 to vector<1x128xf32>
    %29 = arith.mulf %27, %28 : vector<1x128xf32>
    %30 = vector.extract_strided_slice %0 {offsets = [4, 0], sizes = [28, 128], strides = [1, 1]} : vector<32x128xf32> to vector<28x128xf32>
    %31 = vector.extract_strided_slice %0 {offsets = [0, 0], sizes = [4, 128], strides = [1, 1]} : vector<32x128xf32> to vector<4x128xf32>
    %32 = tpu.concatenate %30, %31 in 0 : vector<28x128xf32>, vector<4x128xf32> -> vector<32x128xf32>
    %33 = arith.mulf %0, %32 : vector<32x128xf32>
    %cst_8 = arith.constant dense<0.000000e+00> : vector<128xf32>
    %34 = vector.multi_reduction <add>, %33, %cst_8 [0] : vector<32x128xf32> to vector<128xf32>
    %35 = vector.shape_cast %34 : vector<128xf32> to vector<1x128xf32>
    %cst_9 = arith.constant 0.0833333358 : f32
    %36 = vector.broadcast %cst_9 : f32 to vector<1x128xf32>
    %37 = arith.mulf %35, %36 : vector<1x128xf32>
    %38 = vector.extract_strided_slice %0 {offsets = [5, 0], sizes = [27, 128], strides = [1, 1]} : vector<32x128xf32> to vector<27x128xf32>
    %39 = vector.extract_strided_slice %0 {offsets = [0, 0], sizes = [5, 128], strides = [1, 1]} : vector<32x128xf32> to vector<5x128xf32>
    %40 = tpu.concatenate %38, %39 in 0 : vector<27x128xf32>, vector<5x128xf32> -> vector<32x128xf32>
    %41 = arith.mulf %0, %40 : vector<32x128xf32>
    %cst_10 = arith.constant dense<0.000000e+00> : vector<128xf32>
    %42 = vector.multi_reduction <add>, %41, %cst_10 [0] : vector<32x128xf32> to vector<128xf32>
    %43 = vector.shape_cast %42 : vector<128xf32> to vector<1x128xf32>
    %cst_11 = arith.constant 0.0909090936 : f32
    %44 = vector.broadcast %cst_11 : f32 to vector<1x128xf32>
    %45 = arith.mulf %43, %44 : vector<1x128xf32>
    %46 = vector.extract_strided_slice %0 {offsets = [6, 0], sizes = [26, 128], strides = [1, 1]} : vector<32x128xf32> to vector<26x128xf32>
    %47 = vector.extract_strided_slice %0 {offsets = [0, 0], sizes = [6, 128], strides = [1, 1]} : vector<32x128xf32> to vector<6x128xf32>
    %48 = tpu.concatenate %46, %47 in 0 : vector<26x128xf32>, vector<6x128xf32> -> vector<32x128xf32>
    %49 = arith.mulf %0, %48 : vector<32x128xf32>
    %cst_12 = arith.constant dense<0.000000e+00> : vector<128xf32>
    %50 = vector.multi_reduction <add>, %49, %cst_12 [0] : vector<32x128xf32> to vector<128xf32>
    %51 = vector.shape_cast %50 : vector<128xf32> to vector<1x128xf32>
    %cst_13 = arith.constant 1.000000e-01 : f32
    %52 = vector.broadcast %cst_13 : f32 to vector<1x128xf32>
    %53 = arith.mulf %51, %52 : vector<1x128xf32>
    %54 = vector.extract_strided_slice %0 {offsets = [7, 0], sizes = [25, 128], strides = [1, 1]} : vector<32x128xf32> to vector<25x128xf32>
    %55 = vector.extract_strided_slice %0 {offsets = [0, 0], sizes = [7, 128], strides = [1, 1]} : vector<32x128xf32> to vector<7x128xf32>
    %56 = tpu.concatenate %54, %55 in 0 : vector<25x128xf32>, vector<7x128xf32> -> vector<32x128xf32>
    %57 = arith.mulf %0, %56 : vector<32x128xf32>
    %cst_14 = arith.constant dense<0.000000e+00> : vector<128xf32>
    %58 = vector.multi_reduction <add>, %57, %cst_14 [0] : vector<32x128xf32> to vector<128xf32>
    %59 = vector.shape_cast %58 : vector<128xf32> to vector<1x128xf32>
    %cst_15 = arith.constant 0.111111112 : f32
    %60 = vector.broadcast %cst_15 : f32 to vector<1x128xf32>
    %61 = arith.mulf %59, %60 : vector<1x128xf32>
    %62 = tpu.concatenate %5, %13, %21, %29, %37, %45, %53, %61 in 0 : vector<1x128xf32>, vector<1x128xf32>, vector<1x128xf32>, vector<1x128xf32>, vector<1x128xf32>, vector<1x128xf32>, vector<1x128xf32>, vector<1x128xf32> -> vector<8x128xf32>
    %c0_16 = arith.constant 0 : index
    %c0_17 = arith.constant 0 : index
    %63 = vector.load %arg2[%c0_16, %c0_17] : memref<8x128xf32, #tpu.memory_space<vmem>>, vector<8x128xf32>
    tpu.vector_store %arg2[%c0_16, %c0_17], %62 {strides = array<i32>} : memref<8x128xf32, #tpu.memory_space<vmem>>, vector<8x128xf32>,
    return
  }
  func.func @transform_0(%arg0: i32) -> (i32, i32) {
    %c0_i32 = arith.constant 0 : i32
    %c0_i32_0 = arith.constant 0 : i32
    return %c0_i32, %arg0 : i32, i32
  }
  func.func @transform_1(%arg0: i32) -> (i32, i32) {
    %c0_i32 = arith.constant 0 : i32
    %c0_i32_0 = arith.constant 0 : i32
    return %c0_i32, %arg0 : i32, i32
  }
}

</mosaic_0001>

<llo_original>
// kernel: tpu_custom_call.1
$region0: #{tpu_custom_call.1}
  #allocation0 [shape = 'u32[]', space=smem, size = 0x4, offset = 0x4, fixed_abs, tag = 'smem constant byte address 0x4 - core index']
  #allocation1 [shape = 'u32[144,128]{1,0:T(1,128)}', space=vmem, size = 0x12000, scoped, tag = 'internal scratch']
  %s0 = inlined_call_operand.hbm [shape: f32[32,128], index: 0, kind: input, shape index: {}]
  %s1 = inlined_call_operand.hbm [shape: f32[8,128], index: 1, kind: output, shape index: {}]
  %s2 = sld [smem:[#allocation0]]
  $region18: #{tpu_custom_call.1} parent=0
    _
  %s4 = ssub.s32 1, %s2
  %s5 = scalar_select 0, %s4, %s2
  $region1: #{tpu_custom_call.1} parent=0
    #allocation2 [shape = 'u8[16384]{0}', space=vmem, size = 0x4000, scoped, tag = 'input window, operand 0, single buffered']
    #allocation3 [shape = 's32[1]{0}', space=sflag, size = 0x4, scoped, tag = 'scoped memory for tpu_custom_call.1']
    #allocation4 [shape = 's32[1]{0}', space=sflag, size = 0x4, scoped, tag = 'scoped memory for tpu_custom_call.1']
    #allocation5 [shape = 'u8[4096]{0}', space=vmem, size = 0x1000, scoped, tag = 'output window, operand 0, single buffered']
    %6 = vsyncpa [#allocation3], 0
    %7 = vsyncpa [#allocation4], 0
    // Predicated region
    $region2: #{tpu_custom_call.1} parent=1 // pred_check
      _
    $region3: #{tpu_custom_call.1} parent=1 // pred_check_branch
      %9 = sbr.rel (0) target = $region5
    $region4: #{tpu_custom_call.1} parent=1 // pred_region
      %s11 = ssub.s32 512, 512
      %12 = vsyncadd [#allocation3], %s11
      %s13 = sshll.u32 [#allocation2], 4
      %s14 = int_to_ptr.vmem [resolvable:$true] %s13
      %19 = dma.hbm_to_vmem [thread:$0]  %s0, 512, %s14, [#allocation3], 128, 128, 8
    $region5: #{tpu_custom_call.1} parent=1 // pred_fallthru
      _
    // Predicated region
    $region6: #{tpu_custom_call.1} parent=1 // pred_check
      _
    $region7: #{tpu_custom_call.1} parent=1 // pred_check_branch
      %21 = sbr.rel (0) target = $region9
    $region8: #{tpu_custom_call.1} parent=1 // pred_region
      %22 = dma.done [#allocation3], 512
    $region9: #{tpu_custom_call.1} parent=1 // pred_fallthru
      _
    %v23 = vld [vmem:[#allocation2] sm:$0xff]
    %v24 = vld [vmem:[#allocation2 + $0x8] sm:$0xff]
    %v25 = vld [vmem:[#allocation2 + $0x10] sm:$0xff]
    %v26 = vld [vmem:[#allocation2 + $0x18] sm:$0xff]
    %v27 = vmul.f32 %v23, %v23
    %v28 = vmul.f32 %v24, %v24
    %v29 = vmul.f32 %v25, %v25
    %v30 = vmul.f32 %v26, %v26
    %v31 = vadd.f32 %v27, %v28
    %v32 = vadd.f32 %v31, %v29
    %v33 = vadd.f32 %v32, %v30
    %v34 = vrot.slane %v33, 4
    %v35 = vadd.f32 %v33, %v34
    %v36 = vrot.slane %v35, 2
    %v37 = vadd.f32 %v35, %v36
    %v38 = vrot.slane %v37, 1
    %v39 = vadd.f32 %v37, %v38
    %v40 = vmul.f32 %v39, 0.0625
    %vm45 = vcmask 1046528
    %v46 = vrot.slane %v23, 1
    %v47 = vrot.slane %v24, 1
    %v48 = vsel %vm45, %v46, %v47
    %v49 = vrot.slane %v25, 1
    %v50 = vsel %vm45, %v47, %v49
    %v51 = vrot.slane %v26, 1
    %v52 = vsel %vm45, %v49, %v51
    %v58 = vsel %vm45, %v51, %v46
    %v59 = vmul.f32 %v23, %v48
    %v60 = vmul.f32 %v24, %v50
    %v61 = vmul.f32 %v25, %v52
    %v62 = vmul.f32 %v26, %v58
    %v63 = vadd.f32 %v59, %v60
    %v64 = vadd.f32 %v63, %v61
    %v65 = vadd.f32 %v64, %v62
    %v66 = vrot.slane %v65, 4
    %v67 = vadd.f32 %v65, %v66
    %v68 = vrot.slane %v67, 2
    %v69 = vadd.f32 %v67, %v68
    %v70 = vrot.slane %v69, 1
    %v71 = vadd.f32 %v69, %v70
    %v72 = vmul.f32 %v71, 0.06666667
    %vm73 = vcmask 1045504
    %v74 = vrot.slane %v23, 2
    %v75 = vrot.slane %v24, 2
    %v76 = vsel %vm73, %v74, %v75
    %v77 = vrot.slane %v25, 2
    %v78 = vsel %vm73, %v75, %v77
    %v79 = vrot.slane %v26, 2
    %v80 = vsel %vm73, %v77, %v79
    %v86 = vsel %vm73, %v79, %v74
    %v87 = vmul.f32 %v23, %v76
    %v88 = vmul.f32 %v24, %v78
    %v89 = vmul.f32 %v25, %v80
    %v90 = vmul.f32 %v26, %v86
    %v91 = vadd.f32 %v87, %v88
    %v92 = vadd.f32 %v91, %v89
    %v93 = vadd.f32 %v92, %v90
    %v94 = vrot.slane %v93, 4
    %v95 = vadd.f32 %v93, %v94
    %v96 = vrot.slane %v95, 2
    %v97 = vadd.f32 %v95, %v96
    %v98 = vrot.slane %v97, 1
    %v99 = vadd.f32 %v97, %v98
    %v100 = vmul.f32 %v99, 0.071428575
    %vm101 = vcmask 1044480
    %v102 = vrot.slane %v23, 3
    %v103 = vrot.slane %v24, 3
    %v104 = vsel %vm101, %v102, %v103
    %v105 = vrot.slane %v25, 3
    %v106 = vsel %vm101, %v103, %v105
    %v107 = vrot.slane %v26, 3
    %v108 = vsel %vm101, %v105, %v107
    %v114 = vsel %vm101, %v107, %v102
    %v115 = vmul.f32 %v23, %v104
    %v116 = vmul.f32 %v24, %v106
    %v117 = vmul.f32 %v25, %v108
    %v118 = vmul.f32 %v26, %v114
    %v119 = vadd.f32 %v115, %v116
    %v120 = vadd.f32 %v119, %v117
    %v121 = vadd.f32 %v120, %v118
    %v122 = vrot.slane %v121, 4
    %v123 = vadd.f32 %v121, %v122
    %v124 = vrot.slane %v123, 2
    %v125 = vadd.f32 %v123, %v124
    %v126 = vrot.slane %v125, 1
    %v127 = vadd.f32 %v125, %v126
    %v128 = vmul.f32 %v127, 0.07692308
    %vm129 = vcmask 1043456
    %v130 = vrot.slane %v23, 4
    %v131 = vrot.slane %v24, 4
    %v132 = vsel %vm129, %v130, %v131
    %v133 = vrot.slane %v25, 4
    %v134 = vsel %vm129, %v131, %v133
    %v135 = vrot.slane %v26, 4
    %v136 = vsel %vm129, %v133, %v135
    %v142 = vsel %vm129, %v135, %v130
    %v143 = vmul.f32 %v23, %v132
    %v144 = vmul.f32 %v24, %v134
    %v145 = vmul.f32 %v25, %v136
    %v146 = vmul.f32 %v26, %v142
    %v147 = vadd.f32 %v143, %v144
    %v148 = vadd.f32 %v147, %v145
    %v149 = vadd.f32 %v148, %v146
    %v150 = vrot.slane %v149, 4
    %v151 = vadd.f32 %v149, %v150
    %v152 = vrot.slane %v151, 2
    %v153 = vadd.f32 %v151, %v152
    %v154 = vrot.slane %v153, 1
    %v155 = vadd.f32 %v153, %v154
    %v156 = vmul.f32 %v155, 0.083333336
    %vm157 = vcmask 1042432
    %v158 = vrot.slane %v23, 5
    %v159 = vrot.slane %v24, 5
    %v160 = vsel %vm157, %v158, %v159
    %v161 = vrot.slane %v25, 5
    %v162 = vsel %vm157, %v159, %v161
    %v163 = vrot.slane %v26, 5
    %v164 = vsel %vm157, %v161, %v163
    %v170 = vsel %vm157, %v163, %v158
    %v171 = vmul.f32 %v23, %v160
    %v172 = vmul.f32 %v24, %v162
    %v173 = vmul.f32 %v25, %v164
    %v174 = vmul.f32 %v26, %v170
    %v175 = vadd.f32 %v171, %v172
    %v176 = vadd.f32 %v175, %v173
    %v177 = vadd.f32 %v176, %v174
    %v178 = vrot.slane %v177, 4
    %v179 = vadd.f32 %v177, %v178
    %v180 = vrot.slane %v179, 2
    %v181 = vadd.f32 %v179, %v180
    %v182 = vrot.slane %v181, 1
    %v183 = vadd.f32 %v181, %v182
    %v184 = vmul.f32 %v183, 0.09090909
    %vm185 = vcmask 1041408
    %v186 = vrot.slane %v23, 6
    %v187 = vrot.slane %v24, 6
    %v188 = vsel %vm185, %v186, %v187
    %v189 = vrot.slane %v25, 6
    %v190 = vsel %vm185, %v187, %v189
    %v191 = vrot.slane %v26, 6
    %v192 = vsel %vm185, %v189, %v191
    %v198 = vsel %vm185, %v191, %v186
    %v199 = vmul.f32 %v23, %v188
    %v200 = vmul.f32 %v24, %v190
    %v201 = vmul.f32 %v25, %v192
    %v202 = vmul.f32 %v26, %v198
    %v203 = vadd.f32 %v199, %v200
    %v204 = vadd.f32 %v203, %v201
    %v205 = vadd.f32 %v204, %v202
    %v206 = vrot.slane %v205, 4
    %v207 = vadd.f32 %v205, %v206
    %v208 = vrot.slane %v207, 2
    %v209 = vadd.f32 %v207, %v208
    %v210 = vrot.slane %v209, 1
    %v211 = vadd.f32 %v209, %v210
    %v212 = vmul.f32 %v211, 0.1
    %vm213 = vcmask 1040384
    %v214 = vrot.slane %v23, 7
    %v215 = vrot.slane %v24, 7
    %v216 = vsel %vm213, %v214, %v215
    %v217 = vrot.slane %v25, 7
    %v218 = vsel %vm213, %v215, %v217
    %v219 = vrot.slane %v26, 7
    %v220 = vsel %vm213, %v217, %v219
    %v226 = vsel %vm213, %v219, %v214
    %v227 = vmul.f32 %v23, %v216
    %v228 = vmul.f32 %v24, %v218
    %v229 = vmul.f32 %v25, %v220
    %v230 = vmul.f32 %v26, %v226
    %v231 = vadd.f32 %v227, %v228
    %v232 = vadd.f32 %v231, %v229
    %v233 = vadd.f32 %v232, %v230
    %v234 = vrot.slane %v233, 4
    %v235 = vadd.f32 %v233, %v234
    %v236 = vrot.slane %v235, 2
    %v237 = vadd.f32 %v235, %v236
    %v238 = vrot.slane %v237, 1
    %v239 = vadd.f32 %v237, %v238
    %v240 = vmul.f32 %v239, 0.11111111
    %v241 = vsel %vm213, %v40, %v72
    %v242 = vsel %vm185, %v241, %v100
    %v243 = vsel %vm157, %v242, %v128
    %v244 = vsel %vm129, %v243, %v156
    %v245 = vsel %vm101, %v244, %v184
    %v246 = vsel %vm73, %v245, %v212
    %v247 = vsel %vm45, %v246, %v240
    %248 = vst [vmem:[#allocation5] sm:$0xff] %v247
    // Predicated region
    $region10: #{tpu_custom_call.1} parent=1 // pred_check
      _
    $region11: #{tpu_custom_call.1} parent=1 // pred_check_branch
      %250 = sbr.rel (0) target = $region13
    $region12: #{tpu_custom_call.1} parent=1 // pred_region
      %s252 = ssub.s32 128, 128
      %253 = vsyncadd [#allocation4], %s252
      %s255 = sshll.u32 [#allocation5], 4
      %s256 = int_to_ptr.vmem [resolvable:$true] %s255
      %258 = dma.vmem_to_hbm [thread:$0]  %s256, 128, %s1, [#allocation4]
    $region13: #{tpu_custom_call.1} parent=1 // pred_fallthru
      _
    // Predicated region
    $region14: #{tpu_custom_call.1} parent=1 // pred_check
      _
    $region15: #{tpu_custom_call.1} parent=1 // pred_check_branch
      %260 = sbr.rel (0) target = $region17
    $region16: #{tpu_custom_call.1} parent=1 // pred_region
      %261 = dma.done [#allocation4], 128
    $region17: #{tpu_custom_call.1} parent=1 // pred_fallthru
      _
    %262 = vsyncpa [#allocation3], 1
    %263 = vsyncpa [#allocation4], 1

</llo_original>
